<compile_context>
chip_gen: v5e
topology: v5e:2x2
jax: 0.10.0
libtpu: 0.0.40
codegen_flags: <defaults>
</compile_context>

<pallas_src>
import functools

import numpy as np
import jax
import jax.numpy as jnp
from jax.experimental import pallas as pl
from jax.experimental.pallas import tpu as pltpu


# --------------------------------------------------------------------------
# Kernel 1: matmul + bias (+ReLU), M-tiled parallel grid (backbone stand-in)
# --------------------------------------------------------------------------
def _mm_bias_kernel(x_ref, w_ref, b_ref, o_ref, *, relu):
    y = jnp.dot(x_ref[...], w_ref[...], preferred_element_type=jnp.float32)
    y = y + b_ref[...]
    if relu:
        y = jnp.maximum(y, 0.0)
    o_ref[...] = y.astype(o_ref.dtype)


def matmul_bias(x2d, w, b, relu=False, tm=256):
    """y = x2d @ w + b.  x2d: (M, Cin) bf16, w: (Cin, Cout) bf16, b: (1, Cout) f32."""
    M, Cin = x2d.shape
    Cout = w.shape[1]
    tm = min(tm, M)
    while M % tm:
        tm //= 2
    return pl.pallas_call(
        functools.partial(_mm_bias_kernel, relu=relu),
        out_shape=jax.ShapeDtypeStruct((M, Cout), jnp.float32),
        grid=(M // tm,),
        in_specs=[
            pl.BlockSpec((tm, Cin), lambda i: (i, 0)),
            pl.BlockSpec((Cin, Cout), lambda i: (0, 0)),
            pl.BlockSpec((1, Cout), lambda i: (0, 0)),
        ],
        out_specs=pl.BlockSpec((tm, Cout), lambda i: (i, 0)),
        compiler_params=pltpu.CompilerParams(dimension_semantics=("parallel",)),
    )(x2d, w, b)


# --------------------------------------------------------------------------
# Kernel 2: fused FPN neck — all lateral 1x1 convs + nearest-2x top-down adds
# --------------------------------------------------------------------------
def _neck_kernel(f0_ref, f1_ref, f2_ref, f3_ref,
                 w0_ref, b0_ref, w1_ref, b1_ref,
                 w2_ref, b2_ref, w3_ref, b3_ref,
                 m4_ref, m8_ref, m16_ref,
                 o0_ref, o1_ref, o2_ref, o3_ref):
    def lateral(f_ref, w_ref, b_ref):
        _, h, w, c = f_ref.shape
        x = f_ref[0].reshape(h * w, c).astype(jnp.bfloat16)
        return jnp.dot(x, w_ref[...],
                       preferred_element_type=jnp.float32) + b_ref[...]

    l3 = lateral(f3_ref, w3_ref, b3_ref)                          # (4, 32)
    l2 = lateral(f2_ref, w2_ref, b2_ref) + jnp.dot(
        m4_ref[...], l3, preferred_element_type=jnp.float32)      # (16, 32)
    l1 = lateral(f1_ref, w1_ref, b1_ref) + jnp.dot(
        m8_ref[...], l2, preferred_element_type=jnp.float32)      # (64, 32)
    l0 = lateral(f0_ref, w0_ref, b0_ref) + jnp.dot(
        m16_ref[...], l1, preferred_element_type=jnp.float32)     # (256, 32)

    o0_ref[0] = l0.reshape(o0_ref.shape[1:]).astype(o0_ref.dtype)
    o1_ref[0] = l1.reshape(o1_ref.shape[1:]).astype(o1_ref.dtype)
    o2_ref[0] = l2.reshape(o2_ref.shape[1:]).astype(o2_ref.dtype)
    o3_ref[0] = l3.reshape(o3_ref.shape[1:]).astype(o3_ref.dtype)


def fpn_neck(feats, lateral_params, nearest_mats):
    N = feats[0].shape[0]
    sizes = [f.shape[1] for f in feats]                    # [16, 8, 4, 2]
    C = lateral_params[0][0].shape[1]

    arrays = list(feats)
    specs = [pl.BlockSpec((1,) + f.shape[1:], lambda n: (n, 0, 0, 0))
             for f in feats]
    for w, b in lateral_params:
        arrays += [w, b]
        specs += [pl.BlockSpec(w.shape, lambda n: (0, 0)),
                  pl.BlockSpec(b.shape, lambda n: (0, 0))]
    for tgt in sorted(sizes[:-1]):                         # [4, 8, 16]
        arrays.append(nearest_mats[tgt])
        specs.append(pl.BlockSpec(nearest_mats[tgt].shape, lambda n: (0, 0)))

    return pl.pallas_call(
        _neck_kernel,
        out_shape=tuple(jax.ShapeDtypeStruct((N, s, s, C), jnp.float32)
                        for s in sizes),
        grid=(N,),
        in_specs=specs,
        out_specs=tuple(pl.BlockSpec((1, s, s, C), lambda n: (n, 0, 0, 0))
                        for s in sizes),
        compiler_params=pltpu.CompilerParams(dimension_semantics=("parallel",)),
    )(*arrays)


# --------------------------------------------------------------------------
# Kernel 3: fused FPN 3x3 conv + FPNHead scale-head chain (per level)
# --------------------------------------------------------------------------
def _conv3x3_in_kernel(x, w_ref, b_ref, pad_ref, relu):
    """3x3 stride-1 pad-1 conv via im2col single matmul (K = 9*Cin).
    x: (h, w, C) value; w_ref: (9*C, Cout) bf16; b_ref: (1, Cout) f32;
    pad_ref: zero-bordered bf16 VMEM scratch used as the halo buffer."""
    h, w, c = x.shape
    pad_ref[1:h + 1, 1:w + 1, :] = x.astype(pad_ref.dtype)
    cols = [pad_ref[ky:ky + h, kx:kx + w, :].reshape(h * w, c)
            for ky in range(3) for kx in range(3)]
    col = jnp.concatenate(cols, axis=-1)                   # (h*w, 9*C) bf16
    y = jnp.dot(col, w_ref[...], preferred_element_type=jnp.float32) + b_ref[...]
    if relu:
        y = jnp.maximum(y, 0.0)
    return y.reshape(h, w, -1)                             # f32


def _make_level_kernel(head_len, upsample):
    def kernel(*refs):
        pad_ref = refs[-1]
        o_ref = refs[-2]
        lat_ref, wf_ref, bf_ref = refs[0], refs[1], refs[2]
        head_refs = refs[3:3 + 2 * head_len]
        mat_refs = refs[3 + 2 * head_len:-2]

        pad_ref[...] = jnp.zeros(pad_ref.shape, pad_ref.dtype)

        # FPN 3x3 conv (bias, no activation)
        y = _conv3x3_in_kernel(lat_ref[0], wf_ref, bf_ref, pad_ref, relu=False)

        # scale head: (BN-folded 3x3 conv + ReLU) [+ bilinear 2x upsample]
        for k in range(head_len):
            y = _conv3x3_in_kernel(y, head_refs[2 * k], head_refs[2 * k + 1],
                                   pad_ref, relu=True)
            if upsample:
                h, w, c = y.shape
                up = jnp.dot(mat_refs[k][...], y.reshape(h * w, c),
                             preferred_element_type=jnp.float32)
                y = up.reshape(2 * h, 2 * w, c)

        o_ref[0] = y.astype(o_ref.dtype)
    return kernel


def fused_level(lateral, fpn_w, fpn_b, head_ws, head_bs, mats, out_size):
    N, h0, _, C = lateral.shape
    head_len = len(head_ws)
    upsample = len(mats) > 0
    pmax = (out_size // 2 if upsample else out_size) + 2   # biggest conv + halo

    arrays = [lateral, fpn_w, fpn_b]
    specs = [pl.BlockSpec((1, h0, h0, C), lambda n: (n, 0, 0, 0)),
             pl.BlockSpec(fpn_w.shape, lambda n: (0, 0)),
             pl.BlockSpec(fpn_b.shape, lambda n: (0, 0))]
    for wk, bk in zip(head_ws, head_bs):
        arrays += [wk, bk]
        specs += [pl.BlockSpec(wk.shape, lambda n: (0, 0)),
                  pl.BlockSpec(bk.shape, lambda n: (0, 0))]
    for m in mats:
        arrays.append(m)
        specs.append(pl.BlockSpec(m.shape, lambda n: (0, 0)))

    return pl.pallas_call(
        _make_level_kernel(head_len, upsample),
        out_shape=jax.ShapeDtypeStruct((N, out_size, out_size, C), jnp.float32),
        grid=(N,),
        in_specs=specs,
        out_specs=pl.BlockSpec((1, out_size, out_size, C),
                               lambda n: (n, 0, 0, 0)),
        scratch_shapes=[pltpu.VMEM((pmax, pmax, C), jnp.bfloat16)],
        compiler_params=pltpu.CompilerParams(dimension_semantics=("parallel",)),
    )(*arrays)


# --------------------------------------------------------------------------
# Kernel 4: fused 4-way feature sum + cls_seg
# --------------------------------------------------------------------------
def _make_merge_kernel(n_classes):
    def kernel(h0_ref, h1_ref, h2_ref, h3_ref, w_ref, b_ref, o_ref):
        m = h0_ref[0] + h1_ref[0] + h2_ref[0] + h3_ref[0]      # (H, W, C) f32
        if n_classes == 1:
            # 1x1 conv with a single output channel == lane reduction
            logits = jnp.sum(m * w_ref[...], axis=-1) + b_ref[...]
            o_ref[0] = logits.astype(o_ref.dtype)
        else:
            H, W, C = m.shape
            y = jnp.dot(m.reshape(H * W, C).astype(jnp.bfloat16), w_ref[...],
                        preferred_element_type=jnp.float32) + b_ref[...]
            o_ref[0] = y.reshape(H, W, -1).astype(o_ref.dtype)
    return kernel


def head_merge_cls(heads, cls_w, cls_b, n_classes):
    N, H, W, C = heads[0].shape
    if n_classes == 1:
        w_in = cls_w.reshape(1, C).astype(jnp.float32)
        b_in = cls_b.reshape(1, 1).astype(jnp.float32)
        out_shape = jax.ShapeDtypeStruct((N, H, W), jnp.float32)
        out_spec = pl.BlockSpec((1, H, W), lambda n: (n, 0, 0))
    else:
        w_in = cls_w.astype(jnp.bfloat16)
        b_in = cls_b.reshape(1, n_classes).astype(jnp.float32)
        out_shape = jax.ShapeDtypeStruct((N, H, W, n_classes), jnp.float32)
        out_spec = pl.BlockSpec((1, H, W, n_classes), lambda n: (n, 0, 0, 0))

    out = pl.pallas_call(
        _make_merge_kernel(n_classes),
        out_shape=out_shape,
        grid=(N,),
        in_specs=[pl.BlockSpec((1, H, W, C), lambda n: (n, 0, 0, 0))] * 4
                 + [pl.BlockSpec(w_in.shape, lambda n: (0, 0)),
                    pl.BlockSpec(b_in.shape, lambda n: (0, 0))],
        out_specs=out_spec,
        compiler_params=pltpu.CompilerParams(dimension_semantics=("parallel",)),
    )(*heads, w_in, b_in)

    if n_classes == 1:
        return out[:, None, :, :]                       # NCHW
    return jnp.transpose(out, (0, 3, 1, 2))


# --------------------------------------------------------------------------
# Interpolation matrices (glue; precomputed, fed to the fused kernels)
# --------------------------------------------------------------------------
def _interp_matrix_2x(n, mode):
    out_n = 2 * n
    M = np.zeros((out_n, n), np.float32)
    if mode == "nearest":
        for i in range(out_n):
            M[i, i // 2] = 1.0
    else:  # bilinear, align_corners=False (PyTorch semantics)
        for i in range(out_n):
            src = (i + 0.5) / 2.0 - 0.5
            x0 = int(np.floor(src))
            f = src - x0
            i0 = min(max(x0, 0), n - 1)
            i1 = min(max(x0 + 1, 0), n - 1)
            M[i, i0] += (1.0 - f)
            M[i, i1] += f
    return M


def up2_matrix(h, w, mode):
    return jnp.asarray(np.kron(_interp_matrix_2x(h, mode),
                               _interp_matrix_2x(w, mode)))


# --------------------------------------------------------------------------
# Parameter initialization (deterministic, shapes from the module __init__)
# --------------------------------------------------------------------------
def fold_bn(w, gamma, beta, mean, var, eps=1e-5):
    scale = gamma / jnp.sqrt(var + eps)
    return w * scale, beta - mean * scale


def init_params(img_hw=64):
    key = jax.random.PRNGKey(0)
    keys = iter(jax.random.split(key, 256))
    nk = lambda: next(keys)

    def conv_w(shape, fan_in):
        return jax.random.normal(nk(), shape, jnp.float32) / np.sqrt(fan_in)

    def bias(n):
        return 0.01 * jax.random.normal(nk(), (1, n), jnp.float32)

    def bn(n):
        gamma = 1.0 + 0.1 * jax.random.normal(nk(), (n,), jnp.float32)
        beta = 0.1 * jax.random.normal(nk(), (n,), jnp.float32)
        mean = 0.1 * jax.random.normal(nk(), (n,), jnp.float32)
        var = 1.0 + 0.1 * jnp.abs(jax.random.normal(nk(), (n,), jnp.float32))
        return gamma, beta, mean, var

    in_channels_all = [32, 48, 80, 160, 960]       # mobilenetv4_conv_medium
    num_outs = 4
    in_channels = in_channels_all[-num_outs:]       # [48, 80, 160, 960]
    out_channel = 32
    n_classes = 1
    head_channels = in_channels_all[0]              # n_classes < 24 -> 32
    strides = [2, 4, 8, 16, 32][-num_outs:]         # [4, 8, 16, 32]

    params = {"strides": strides, "n_classes": n_classes}

    # backbone stand-in: 1x1 conv (3 -> C_i) + ReLU per stage (bf16 weights)
    params["backbone"] = [(conv_w((3, c), 3).astype(jnp.bfloat16), bias(c))
                          for c in in_channels]

    # FPN lateral 1x1 convs (conv+bias, no act)
    params["lateral"] = [(conv_w((c, out_channel), c).astype(jnp.bfloat16),
                          bias(out_channel)) for c in in_channels]

    # FPN 3x3 convs (conv+bias, no act), stored im2col-reshaped (9*Cin, Cout)
    def w3x3(cin, cout):
        return conv_w((3, 3, cin, cout), 9 * cin)

    params["fpn"] = [(w3x3(out_channel, out_channel)
                      .reshape(9 * out_channel, out_channel).astype(jnp.bfloat16),
                      bias(out_channel)) for _ in range(num_outs)]

    # FPNHead scale heads: head_length x (3x3 conv no-bias + BN + ReLU), folded
    params["scale_heads"] = []
    for s in strides:
        head_length = max(1, int(np.log2(s) - np.log2(strides[0])))
        convs = []
        for _ in range(head_length):
            w = w3x3(head_channels, head_channels)
            g, b_, m, v = bn(head_channels)
            wf, bf = fold_bn(w, g, b_, m, v)
            convs.append((wf.reshape(9 * head_channels, head_channels)
                          .astype(jnp.bfloat16),
                          bf.reshape(1, head_channels).astype(jnp.float32)))
        params["scale_heads"].append(convs)

    # cls_seg: 1x1 conv channels -> n_classes
    params["cls_w"] = conv_w((head_channels, n_classes), head_channels)
    params["cls_b"] = 0.01 * jax.random.normal(nk(), (n_classes,), jnp.float32)

    # 2x interpolation matrices keyed by target size (kept f32 for exactness)
    sizes = [img_hw // s for s in strides]          # [16, 8, 4, 2]
    params["nearest_mats"] = {2 * h: up2_matrix(h, h, "nearest")
                              for h in sizes[1:]}   # neck top-down
    params["bilinear_mats"] = {2 * h: up2_matrix(h, h, "bilinear")
                               for h in sizes[1:]}  # head Upsample
    return params


# --------------------------------------------------------------------------
# OCDFPN forward
# --------------------------------------------------------------------------
def ocdfpn_forward(x_nchw, params):
    x = jnp.transpose(x_nchw, (0, 2, 3, 1)).astype(jnp.float32)   # NHWC
    N, H, W, _ = x.shape
    strides = params["strides"]

    # ---- backbone stand-in (see TODO at top) ----
    feats = []
    for s, (w, b) in zip(strides, params["backbone"]):
        h, wd = H // s, W // s
        pooled = x.reshape(N, h, s, wd, s, 3).mean(axis=(2, 4))
        y = matmul_bias(pooled.reshape(N * h * wd, 3).astype(jnp.bfloat16),
                        w, b, relu=True)
        feats.append(y.reshape(N, h, wd, -1))

    # ---- FPN neck: fused lateral 1x1 convs + nearest-2x top-down adds ----
    laterals = fpn_neck(feats, params["lateral"], params["nearest_mats"])

    # ---- FPNHead: per level, fused FPN 3x3 conv + scale-head chain ----
    out_size = feats[0].shape[1]
    heads = []
    for i, s in enumerate(strides):
        fw, fb = params["fpn"][i]
        convs = params["scale_heads"][i]
        hws = [c[0] for c in convs]
        hbs = [c[1] for c in convs]
        if s != strides[0]:
            h0 = laterals[i].shape[1]
            mats = [params["bilinear_mats"][h0 * 2 ** (k + 1)]
                    for k in range(len(convs))]
        else:
            mats = []
        heads.append(fused_level(laterals[i], fw, fb, hws, hbs, mats, out_size))

    # TODO(synk): nn.Dropout2d(0.1) omitted (inference/eval mode -> identity).
    return head_merge_cls(heads, params["cls_w"], params["cls_b"],
                          params["n_classes"])


# --------------------------------------------------------------------------
if __name__ == "__main__":
    IMG = 64
    params = init_params(img_hw=IMG)
    x = jax.random.normal(jax.random.PRNGKey(0), (2, 3, IMG, IMG), jnp.float32)
    out = ocdfpn_forward(x, params)
    out = jax.block_until_ready(out)
    assert out.shape == (2, 1, IMG // 4, IMG // 4), out.shape
    assert bool(jnp.all(jnp.isfinite(out)))
    print("KERNEL_OK")
</pallas_src>

<mosaic_0001>
module attributes {stable_mosaic.version = 11 : i64} {
  func.func @_mm_bias_kernel(%arg0: i32, %arg1: memref<256x3xbf16, #tpu.memory_space<vmem>>, %arg2: memref<3x48xbf16, #tpu.memory_space<vmem>>, %arg3: memref<1x48xf32, #tpu.memory_space<vmem>>, %arg4: memref<256x48xf32, #tpu.memory_space<vmem>>) attributes {dimension_semantics = [#tpu.dimension_semantics<parallel>], iteration_bounds = array<i64: 2>, scalar_prefetch = 0 : i64, scratch_operands = 0 : i64, tpu.core_type = #tpu.core_type<tc>, window_params = [{transform_indices = @transform_0, window_bounds = array<i64: 256, 3>}, {pipeline_mode = #tpu.pipeline_mode<synchronous>, transform_indices = @transform_1, window_bounds = array<i64: 3, 48>}, {pipeline_mode = #tpu.pipeline_mode<synchronous>, transform_indices = @transform_2, window_bounds = array<i64: 1, 48>}, {transform_indices = @transform_3, window_bounds = array<i64: 256, 48>}]} {
    %c0 = arith.constant 0 : index
    %c0_0 = arith.constant 0 : index
    %0 = vector.load %arg1[%c0, %c0_0] : memref<256x3xbf16, #tpu.memory_space<vmem>>, vector<256x3xbf16>
    %c0_1 = arith.constant 0 : index
    %c0_2 = arith.constant 0 : index
    %1 = vector.load %arg2[%c0_1, %c0_2] : memref<3x48xbf16, #tpu.memory_space<vmem>>, vector<3x48xbf16>
    %cst = arith.constant dense<0.000000e+00> : vector<256x48xf32>
    %2 = tpu.matmul %0, %1, %cst {dimension_numbers = #tpu.dot_dimension_numbers<[1], [0], [0], [1], [0, 0, 1, 1], [], []>} : vector<256x3xbf16>, vector<3x48xbf16>, vector<256x48xf32> -> vector<256x48xf32>
    %c0_3 = arith.constant 0 : index
    %c0_4 = arith.constant 0 : index
    %3 = vector.load %arg3[%c0_3, %c0_4] : memref<1x48xf32, #tpu.memory_space<vmem>>, vector<1x48xf32>
    %4 = vector.broadcast %3 : vector<1x48xf32> to vector<256x48xf32>
    %5 = arith.addf %2, %4 : vector<256x48xf32>
    %cst_5 = arith.constant 0.000000e+00 : f32
    %6 = vector.broadcast %cst_5 : f32 to vector<256x48xf32>
    %7 = arith.maximumf %5, %6 : vector<256x48xf32>
    %c0_6 = arith.constant 0 : index
    %c0_7 = arith.constant 0 : index
    %8 = vector.load %arg4[%c0_6, %c0_7] : memref<256x48xf32, #tpu.memory_space<vmem>>, vector<256x48xf32>
    tpu.vector_store %arg4[%c0_6, %c0_7], %7 {strides = array<i32>} : memref<256x48xf32, #tpu.memory_space<vmem>>, vector<256x48xf32>,
    return
  }
  func.func @transform_0(%arg0: i32) -> (i32, i32) {
    %c0_i32 = arith.constant 0 : i32
    %c0_i32_0 = arith.constant 0 : i32
    return %arg0, %c0_i32 : i32, i32
  }
  func.func @transform_1(%arg0: i32) -> (i32, i32) {
    %c0_i32 = arith.constant 0 : i32
    %c0_i32_0 = arith.constant 0 : i32
    %c0_i32_1 = arith.constant 0 : i32
    return %c0_i32, %c0_i32_0 : i32, i32
  }
  func.func @transform_2(%arg0: i32) -> (i32, i32) {
    %c0_i32 = arith.constant 0 : i32
    %c0_i32_0 = arith.constant 0 : i32
    %c0_i32_1 = arith.constant 0 : i32
    return %c0_i32, %c0_i32_0 : i32, i32
  }
  func.func @transform_3(%arg0: i32) -> (i32, i32) {
    %c0_i32 = arith.constant 0 : i32
    %c0_i32_0 = arith.constant 0 : i32
    return %arg0, %c0_i32 : i32, i32
  }
}

</mosaic_0001>

<llo_original>
// kernel: tpu_custom_call.1
$region0: #{tpu_custom_call.1}
  #allocation0 [shape = 'u32[]', space=smem, size = 0x4, offset = 0x4, fixed_abs, tag = 'smem constant byte address 0x4 - core index']
  #allocation1 [shape = 'u32[72,128]{1,0:T(1,128)}', space=vmem, size = 0x9000, scoped, tag = 'internal scratch']
  %s0 = inlined_call_operand.vmem [shape: bf16[512,3], index: 0, kind: input, shape index: {}]
  %s1 = inlined_call_operand.vmem [shape: bf16[3,48], index: 1, kind: input, shape index: {}]
  %s2 = inlined_call_operand.vmem [shape: f32[1,48], index: 2, kind: input, shape index: {}]
  %s3 = inlined_call_operand.vmem [shape: f32[512,48], index: 3, kind: output, shape index: {}]
  %s4 = sld [smem:[#allocation0]]
  $region45: #{tpu_custom_call.1} parent=0
    _
  %s6 = ssub.s32 1, %s4
  %s7 = scalar_select 0, %s6, %s4
  loop: start=0, step=1, limit=4
  $region2: #{tpu_custom_call.1} parent=0 // loop_pre_header
    _
  $region3: #{tpu_custom_call.1} parent=0 // loop_header
    %s9 = sphi 0, %s13
    %p10 = scmp.ge.s32.totalorder %s9, 4
    %s19 = sphi 0, %s21
    %s22 = sphi 0, %s19
    %s23 = sphi 0, %s22
    %s39 = sphi 0, %s23
    %s43 = sphi 0, %s43
    %s45 = sphi 0, %s43
    %s46 = sphi 0, %s45
    %s60 = sphi 0, %s46
    %s64 = sphi 0, %s64
    %s66 = sphi 0, %s64
    %s67 = sphi 0, %s66
    %s81 = sphi 0, %s67
    %s87 = sphi 0, %s89
    %s90 = sphi 0, %s87
    %s91 = sphi 0, %s90
    %s107 = sphi 0, %s91
  $region4: #{tpu_custom_call.1} parent=0 // loop_header_branch
    %12 = sbr.rel (%p10) target = $region8
  $region5: #{tpu_custom_call.1} parent=0 // loop_body
    %s14 = ssub.s32 %s9, 1
    %s15 = ssub.s32 %s9, 2
    %s16 = sadd.s32 %s9, 1
    %s17 = ssub.s32 %s9, %s16
    %p18 = scmp.eq.s32.totalorder %s17, 0
    %s20 = sadd.s32 %s19, 1
    %s21 = scalar_select %p18, %s19, %s20
    %p24 = pneg %p18
    %p25 = scmp.eq.s32.totalorder %s9, 1
    %p26 = por %p24, %p25
    %p27 = scmp.ne.s32.totalorder %s19, %s22
    %p28 = scmp.eq.s32.totalorder %s9, 0
    %p29 = por %p27, %p28
    %p30 = scmp.ne.s32.totalorder %s19, %s22
    %p31 = scmp.eq.s32.totalorder %s14, 1
    %p32 = por %p30, %p31
    %p33 = scmp.ne.s32.totalorder %s22, %s23
    %p34 = scmp.eq.s32.totalorder %s14, 0
    %p35 = por %p33, %p34
    %p36 = scmp.ne.s32.totalorder %s22, %s23
    %p37 = scmp.eq.s32.totalorder %s15, 1
    %p38 = por %p36, %p37
    %p40 = scmp.ne.s32.totalorder %s23, %s39
    %p41 = scmp.eq.s32.totalorder %s15, 0
    %p42 = por %p40, %p41
    %s44 = sadd.s32 %s43, 1
    %p47 = scmp.eq.s32.totalorder %s9, 1
    %p48 = scmp.ne.s32.totalorder %s43, %s45
    %p49 = scmp.eq.s32.totalorder %s9, 0
    %p50 = por %p48, %p49
    %p51 = scmp.ne.s32.totalorder %s43, %s45
    %p52 = scmp.eq.s32.totalorder %s14, 1
    %p53 = por %p51, %p52
    %p54 = scmp.ne.s32.totalorder %s45, %s46
    %p55 = scmp.eq.s32.totalorder %s14, 0
    %p56 = por %p54, %p55
    %p57 = scmp.ne.s32.totalorder %s45, %s46
    %p58 = scmp.eq.s32.totalorder %s15, 1
    %p59 = por %p57, %p58
    %p61 = scmp.ne.s32.totalorder %s46, %s60
    %p62 = scmp.eq.s32.totalorder %s15, 0
    %p63 = por %p61, %p62
    %s65 = sadd.s32 %s64, 1
    %p68 = scmp.eq.s32.totalorder %s9, 1
    %p69 = scmp.ne.s32.totalorder %s64, %s66
    %p70 = scmp.eq.s32.totalorder %s9, 0
    %p71 = por %p69, %p70
    %p72 = scmp.ne.s32.totalorder %s64, %s66
    %p73 = scmp.eq.s32.totalorder %s14, 1
    %p74 = por %p72, %p73
    %p75 = scmp.ne.s32.totalorder %s66, %s67
    %p76 = scmp.eq.s32.totalorder %s14, 0
    %p77 = por %p75, %p76
    %p78 = scmp.ne.s32.totalorder %s66, %s67
    %p79 = scmp.eq.s32.totalorder %s15, 1
    %p80 = por %p78, %p79
    %p82 = scmp.ne.s32.totalorder %s67, %s81
    %p83 = scmp.eq.s32.totalorder %s15, 0
    %p84 = por %p82, %p83
    %s85 = ssub.s32 %s9, %s16
    %p86 = scmp.eq.s32.totalorder %s85, 0
    %s88 = sadd.s32 %s87, 1
    %s89 = scalar_select %p86, %s87, %s88
    %p92 = pneg %p86
    %p93 = scmp.eq.s32.totalorder %s9, 1
    %p94 = por %p92, %p93
    %p95 = scmp.ne.s32.totalorder %s87, %s90
    %p96 = scmp.eq.s32.totalorder %s9, 0
    %p97 = por %p95, %p96
    %p98 = scmp.ne.s32.totalorder %s87, %s90
    %p99 = scmp.eq.s32.totalorder %s14, 1
    %p100 = por %p98, %p99
    %p101 = scmp.ne.s32.totalorder %s90, %s91
    %p102 = scmp.eq.s32.totalorder %s14, 0
    %p103 = por %p101, %p102
    %p104 = scmp.ne.s32.totalorder %s90, %s91
    %p105 = scmp.eq.s32.totalorder %s15, 1
    %p106 = por %p104, %p105
    %p108 = scmp.ne.s32.totalorder %s91, %s107
    %p109 = scmp.eq.s32.totalorder %s15, 0
    %p110 = por %p108, %p109
    %p111 = scmp.le.s32.totalorder 1, %s9
    %p112 = scmp.lt.s32.totalorder %s9, 3
    %p113 = pnand %p111, %p112
    %p114 = pneg %p113
    // Predicated region
    $region9: #{tpu_custom_call.1} parent=5 // pred_check
      _
    $region10: #{tpu_custom_call.1} parent=5 // pred_check_branch
      %116 = sbr.rel (%p113) target = $region12
    $region11: #{tpu_custom_call.1} parent=5 // pred_region
      %s117 = ssub.s32 %s9, 1
      // Predicated region
      $region13: #{tpu_custom_call.1} parent=11 // pred_check
        %p118 = pneg %p56
      $region14: #{tpu_custom_call.1} parent=11 // pred_check_branch
        %120 = sbr.rel (%p118) target = $region16
      $region15: #{tpu_custom_call.1} parent=11 // pred_region
        _
      $region16: #{tpu_custom_call.1} parent=11 // pred_fallthru
        _
      // Predicated region
      $region17: #{tpu_custom_call.1} parent=11 // pred_check
        %p121 = pneg %p77
      $region18: #{tpu_custom_call.1} parent=11 // pred_check_branch
        %123 = sbr.rel (%p121) target = $region20
      $region19: #{tpu_custom_call.1} parent=11 // pred_region
        _
      $region20: #{tpu_custom_call.1} parent=11 // pred_fallthru
        _
    $region12: #{tpu_custom_call.1} parent=5 // pred_fallthru
      _
    %p124 = scmp.lt.s32.totalorder %s9, 2
    // Predicated region
    $region21: #{tpu_custom_call.1} parent=5 // pred_check
      %p125 = pneg %p124
    $region22: #{tpu_custom_call.1} parent=5 // pred_check_branch
      %127 = sbr.rel (%p125) target = $region24
    $region23: #{tpu_custom_call.1} parent=5 // pred_region
      // Predicated region
      $region25: #{tpu_custom_call.1} parent=23 // pred_check
        %p128 = pneg %p29
      $region26: #{tpu_custom_call.1} parent=23 // pred_check_branch
        %130 = sbr.rel (%p128) target = $region28
      $region27: #{tpu_custom_call.1} parent=23 // pred_region
        %s131 = smul.u32 32, %s9
        %p132 = scmp.lt.s32.totalorder %s131, 63
        %s133 = scalar_select %p132, %s131, 63
        %s134 = smul.addr %s133, 4
        %s135 = scalar_lea.vmem %s0, %s134
        %s136 = smul.u32 32, %s9
      $region28: #{tpu_custom_call.1} parent=23 // pred_fallthru
        _
    $region24: #{tpu_custom_call.1} parent=5 // pred_fallthru
      _
    %p137 = scmp.le.s32.totalorder 1, %s9
    %p138 = scmp.lt.s32.totalorder %s9, 3
    %p139 = pnand %p137, %p138
    %p140 = pneg %p139
    // Predicated region
    $region29: #{tpu_custom_call.1} parent=5 // pred_check
      _
    $region30: #{tpu_custom_call.1} parent=5 // pred_check_branch
      %142 = sbr.rel (%p139) target = $region32
    $region31: #{tpu_custom_call.1} parent=5 // pred_region
      %s143 = ssub.s32 %s9, 1
      %s144 = smul.u32 32, %s14
      %p145 = scmp.lt.s32.totalorder %s144, 63
      %s146 = scalar_select %p145, %s144, 63
      %s147 = smul.addr %s146, 4
      %s148 = scalar_lea.vmem %s0, %s147
      %p149 = pneg %p35
      %p150 = pneg %p32
      %p151 = pneg %p56
      %p152 = pneg %p53
      %p153 = pneg %p77
      %p154 = pneg %p74
      %p155 = pneg %p103
      %p156 = pneg %p100
      %s157 = smul.u32 32, %s14
      %p158 = scmp.lt.s32.totalorder %s157, 63
      %s159 = scalar_select %p158, %s157, 63
      %s160 = smul.addr %s159, 8
      %s161 = scalar_lea.vmem %s3, %s160
      %s162 = smul.u32 32, %s14
      %p163 = scmp.lt.s32.totalorder %s162, 63
      %s164 = scalar_select %p163, %s162, 63
      %s165 = smul.addr %s164, 4
      %s166 = scalar_lea.vmem %s0, %s165
      %s167 = smul.u32 32, %s14
      %s168 = smul.u32 32, %s14
      %p169 = scmp.lt.s32.totalorder %s168, 63
      %s170 = scalar_select %p169, %s168, 63
      %s171 = smul.addr %s170, 8
      %s172 = scalar_lea.vmem %s3, %s171
      %s173 = smul.u32 32, %s14
      %v175 = vld [vmem:[%s166] sm:$0xf]
      %v176 = vld [vmem:[%s166 + $0x4] sm:$0xf]
      %v177 = vld [vmem:[%s166 + $0x8] sm:$0xf]
      %v178 = vld [vmem:[%s166 + $0xc] sm:$0xf]
      %v179 = vld [vmem:[%s166 + $0x10] sm:$0xf]
      %v180 = vld [vmem:[%s166 + $0x14] sm:$0xf]
      %v181 = vld [vmem:[%s166 + $0x18] sm:$0xf]
      %v182 = vld [vmem:[%s166 + $0x1c] sm:$0xf]
      %v183 = vld [vmem:[%s166 + $0x20] sm:$0xf]
      %v184 = vld [vmem:[%s166 + $0x24] sm:$0xf]
      %v185 = vld [vmem:[%s166 + $0x28] sm:$0xf]
      %v186 = vld [vmem:[%s166 + $0x2c] sm:$0xf]
      %v187 = vld [vmem:[%s166 + $0x30] sm:$0xf]
      %v188 = vld [vmem:[%s166 + $0x34] sm:$0xf]
      %v189 = vld [vmem:[%s166 + $0x38] sm:$0xf]
      %v190 = vld [vmem:[%s166 + $0x3c] sm:$0xf]
      %v191 = vld [vmem:[%s166 + $0x40] sm:$0xf]
      %v192 = vld [vmem:[%s166 + $0x44] sm:$0xf]
      %v193 = vld [vmem:[%s166 + $0x48] sm:$0xf]
      %v194 = vld [vmem:[%s166 + $0x4c] sm:$0xf]
      %v195 = vld [vmem:[%s166 + $0x50] sm:$0xf]
      %v196 = vld [vmem:[%s166 + $0x54] sm:$0xf]
      %v197 = vld [vmem:[%s166 + $0x58] sm:$0xf]
      %v198 = vld [vmem:[%s166 + $0x5c] sm:$0xf]
      %v199 = vld [vmem:[%s166 + $0x60] sm:$0xf]
      %v200 = vld [vmem:[%s166 + $0x64] sm:$0xf]
      %v201 = vld [vmem:[%s166 + $0x68] sm:$0xf]
      %v202 = vld [vmem:[%s166 + $0x6c] sm:$0xf]
      %v203 = vld [vmem:[%s166 + $0x70] sm:$0xf]
      %v204 = vld [vmem:[%s166 + $0x74] sm:$0xf]
      %v205 = vld [vmem:[%s166 + $0x78] sm:$0xf]
      %v206 = vld [vmem:[%s166 + $0x7c] sm:$0xf]
      %v207 = vld [vmem:[%s1] sm:$0x3]
      %v208 = vld [vmem:[%s2] sm:$0x1]
      %v210 = vperm.slane %v208, 0
      %v244 = vunpack.c.l.b16 %v175
      %v245 = vunpack.c.l.b16 %v176
      %v246 = vunpack.c.l.b16 %v177
      %v247 = vunpack.c.l.b16 %v178
      %v248 = vunpack.c.l.b16 %v179
      %v249 = vunpack.c.l.b16 %v180
      %v250 = vunpack.c.l.b16 %v181
      %v251 = vunpack.c.l.b16 %v182
      %v252 = vunpack.c.l.b16 %v183
      %v253 = vunpack.c.l.b16 %v184
      %v254 = vunpack.c.l.b16 %v185
      %v255 = vunpack.c.l.b16 %v186
      %v256 = vunpack.c.l.b16 %v187
      %v257 = vunpack.c.l.b16 %v188
      %v258 = vunpack.c.l.b16 %v189
      %v259 = vunpack.c.l.b16 %v190
      %v260 = vunpack.c.l.b16 %v191
      %v261 = vunpack.c.l.b16 %v192
      %v262 = vunpack.c.l.b16 %v193
      %v263 = vunpack.c.l.b16 %v194
      %v264 = vunpack.c.l.b16 %v195
      %v265 = vunpack.c.l.b16 %v196
      %v266 = vunpack.c.l.b16 %v197
      %v267 = vunpack.c.l.b16 %v198
      %v268 = vunpack.c.l.b16 %v199
      %v269 = vunpack.c.l.b16 %v200
      %v270 = vunpack.c.l.b16 %v201
      %v271 = vunpack.c.l.b16 %v202
      %v272 = vunpack.c.l.b16 %v203
      %v273 = vunpack.c.l.b16 %v204
      %v274 = vunpack.c.l.b16 %v205
      %v275 = vunpack.c.l.b16 %v206
      %v276 = vpack.c.b16 %v245, %v244
      %v277 = vpack.c.b16 %v247, %v246
      %v278 = vpack.c.b16 %v249, %v248
      %v279 = vpack.c.b16 %v251, %v250
      %v280 = vpack.c.b16 %v253, %v252
      %v281 = vpack.c.b16 %v255, %v254
      %v282 = vpack.c.b16 %v257, %v256
      %v283 = vpack.c.b16 %v259, %v258
      %v284 = vpack.c.b16 %v261, %v260
      %v285 = vpack.c.b16 %v263, %v262
      %v286 = vpack.c.b16 %v265, %v264
      %v287 = vpack.c.b16 %v267, %v266
      %v288 = vpack.c.b16 %v269, %v268
      %v289 = vpack.c.b16 %v271, %v270
      %v290 = vpack.c.b16 %v273, %v272
      %v291 = vpack.c.b16 %v275, %v274
      %vm292 = vcmask 23552
      %v294 = vsel %vm292, %v276, 0
      %v297 = vsel %vm292, %v277, 0
      %v300 = vsel %vm292, %v278, 0
      %v303 = vsel %vm292, %v279, 0
      %v306 = vsel %vm292, %v280, 0
      %v309 = vsel %vm292, %v281, 0
      %v312 = vsel %vm292, %v282, 0
      %v315 = vsel %vm292, %v283, 0
      %v318 = vsel %vm292, %v284, 0
      %v321 = vsel %vm292, %v285, 0
      %v324 = vsel %vm292, %v286, 0
      %v327 = vsel %vm292, %v287, 0
      %v330 = vsel %vm292, %v288, 0
      %v333 = vsel %vm292, %v289, 0
      %v336 = vsel %vm292, %v290, 0
      %v339 = vsel %vm292, %v291, 0
      %vm341 = vcmask 1040384
      %vm342 = vcmask 1041408
      %v343 = vsel %vm341, 4294967295, 65535
      %v344 = vsel %vm342, %v343, 0
      %v346 = vand.u32 %v207, %v344
      %348 = vmatpush.bf16.msra.mxu0 0
      %349 = vmatpush.bf16.msra.mxu0 0
      %350 = vmatpush.bf16.msra.mxu0 0
      %351 = vmatpush.bf16.msra.mxu0 0
      %352 = vmatpush.bf16.msra.mxu0 0
      %353 = vmatpush.bf16.msra.mxu0 0
      %354 = vmatpush.bf16.msra.mxu0 0
      %355 = vmatpush.bf16.msra.mxu0 %v346
      %356 = vmatmul.bf16.gmra.mxu0 %v294
      %v357 = vpop.f32.mrf.mxu0
      %v358 = vadd.f32 %v210, %v357
      %v359 = vpop.f32.mrf.mxu0
      %v360 = vadd.f32 %v210, %v359
      %361 = vmatmul.bf16.gmra.mxu0 %v297
      %v362 = vpop.f32.mrf.mxu0
      %v363 = vadd.f32 %v210, %v362
      %v364 = vpop.f32.mrf.mxu0
      %v365 = vadd.f32 %v210, %v364
      %366 = vmatmul.bf16.gmra.mxu0 %v300
      %v367 = vpop.f32.mrf.mxu0
      %v368 = vadd.f32 %v210, %v367
      %v369 = vpop.f32.mrf.mxu0
      %v370 = vadd.f32 %v210, %v369
      %371 = vmatmul.bf16.gmra.mxu0 %v303
      %v372 = vpop.f32.mrf.mxu0
      %v373 = vadd.f32 %v210, %v372
      %v374 = vpop.f32.mrf.mxu0
      %v375 = vadd.f32 %v210, %v374
      %376 = vmatmul.bf16.gmra.mxu0 %v306
      %v377 = vpop.f32.mrf.mxu0
      %v378 = vadd.f32 %v210, %v377
      %v379 = vpop.f32.mrf.mxu0
      %v380 = vadd.f32 %v210, %v379
      %381 = vmatmul.bf16.gmra.mxu0 %v309
      %v382 = vpop.f32.mrf.mxu0
      %v383 = vadd.f32 %v210, %v382
      %v384 = vpop.f32.mrf.mxu0
      %v385 = vadd.f32 %v210, %v384
      %386 = vmatmul.bf16.gmra.mxu0 %v312
      %v387 = vpop.f32.mrf.mxu0
      %v388 = vadd.f32 %v210, %v387
      %v389 = vpop.f32.mrf.mxu0
      %v390 = vadd.f32 %v210, %v389
      %391 = vmatmul.bf16.gmra.mxu0 %v315
      %v392 = vpop.f32.mrf.mxu0
      %v393 = vadd.f32 %v210, %v392
      %v394 = vpop.f32.mrf.mxu0
      %v395 = vadd.f32 %v210, %v394
      %396 = vmatmul.bf16.gmra.mxu0 %v318
      %v397 = vpop.f32.mrf.mxu0
      %v398 = vadd.f32 %v210, %v397
      %v399 = vpop.f32.mrf.mxu0
      %v400 = vadd.f32 %v210, %v399
      %401 = vmatmul.bf16.gmra.mxu0 %v321
      %v402 = vpop.f32.mrf.mxu0
      %v403 = vadd.f32 %v210, %v402
      %v404 = vpop.f32.mrf.mxu0
      %v405 = vadd.f32 %v210, %v404
      %406 = vmatmul.bf16.gmra.mxu0 %v324
      %v407 = vpop.f32.mrf.mxu0
      %v408 = vadd.f32 %v210, %v407
      %v409 = vpop.f32.mrf.mxu0
      %v410 = vadd.f32 %v210, %v409
      %411 = vmatmul.bf16.gmra.mxu0 %v327
      %v412 = vpop.f32.mrf.mxu0
      %v413 = vadd.f32 %v210, %v412
      %v414 = vpop.f32.mrf.mxu0
      %v415 = vadd.f32 %v210, %v414
      %416 = vmatmul.bf16.gmra.mxu0 %v330
      %v417 = vpop.f32.mrf.mxu0
      %v418 = vadd.f32 %v210, %v417
      %v419 = vpop.f32.mrf.mxu0
      %v420 = vadd.f32 %v210, %v419
      %421 = vmatmul.bf16.gmra.mxu0 %v333
      %v422 = vpop.f32.mrf.mxu0
      %v423 = vadd.f32 %v210, %v422
      %v424 = vpop.f32.mrf.mxu0
      %v425 = vadd.f32 %v210, %v424
      %426 = vmatmul.bf16.gmra.mxu0 %v336
      %v427 = vpop.f32.mrf.mxu0
      %v428 = vadd.f32 %v210, %v427
      %v429 = vpop.f32.mrf.mxu0
      %v430 = vadd.f32 %v210, %v429
      %431 = vmatmul.bf16.gmra.mxu0 %v339
      %v432 = vpop.f32.mrf.mxu0
      %v433 = vadd.f32 %v210, %v432
      %v434 = vpop.f32.mrf.mxu0
      %v435 = vadd.f32 %v210, %v434
      %436 = vdwg.mxu0
      %v437 = vmax.f32 %v358, 0.0
      %v438 = vmax.f32 %v360, 0.0
      %v439 = vmax.f32 %v363, 0.0
      %v440 = vmax.f32 %v365, 0.0
      %v441 = vmax.f32 %v368, 0.0
      %v442 = vmax.f32 %v370, 0.0
      %v443 = vmax.f32 %v373, 0.0
      %v444 = vmax.f32 %v375, 0.0
      %v445 = vmax.f32 %v378, 0.0
      %v446 = vmax.f32 %v380, 0.0
      %v447 = vmax.f32 %v383, 0.0
      %v448 = vmax.f32 %v385, 0.0
      %v449 = vmax.f32 %v388, 0.0
      %v450 = vmax.f32 %v390, 0.0
      %v451 = vmax.f32 %v393, 0.0
      %v452 = vmax.f32 %v395, 0.0
      %v453 = vmax.f32 %v398, 0.0
      %v454 = vmax.f32 %v400, 0.0
      %v455 = vmax.f32 %v403, 0.0
      %v456 = vmax.f32 %v405, 0.0
      %v457 = vmax.f32 %v408, 0.0
      %v458 = vmax.f32 %v410, 0.0
      %v459 = vmax.f32 %v413, 0.0
      %v460 = vmax.f32 %v415, 0.0
      %v461 = vmax.f32 %v418, 0.0
      %v462 = vmax.f32 %v420, 0.0
      %v463 = vmax.f32 %v423, 0.0
      %v464 = vmax.f32 %v425, 0.0
      %v465 = vmax.f32 %v428, 0.0
      %v466 = vmax.f32 %v430, 0.0
      %v467 = vmax.f32 %v433, 0.0
      %v468 = vmax.f32 %v435, 0.0
      %vm469 = vcmask 392192
      %470 = vst.msk [vmem:[%s172] sm:$0xff] %vm469, %v437
      %471 = vst.msk [vmem:[%s172 + $0x8] sm:$0xff] %vm469, %v438
      %472 = vst.msk [vmem:[%s172 + $0x10] sm:$0xff] %vm469, %v439
      %473 = vst.msk [vmem:[%s172 + $0x18] sm:$0xff] %vm469, %v440
      %474 = vst.msk [vmem:[%s172 + $0x20] sm:$0xff] %vm469, %v441
      %475 = vst.msk [vmem:[%s172 + $0x28] sm:$0xff] %vm469, %v442
      %476 = vst.msk [vmem:[%s172 + $0x30] sm:$0xff] %vm469, %v443
      %477 = vst.msk [vmem:[%s172 + $0x38] sm:$0xff] %vm469, %v444
      %478 = vst.msk [vmem:[%s172 + $0x40] sm:$0xff] %vm469, %v445
      %479 = vst.msk [vmem:[%s172 + $0x48] sm:$0xff] %vm469, %v446
      %480 = vst.msk [vmem:[%s172 + $0x50] sm:$0xff] %vm469, %v447
      %481 = vst.msk [vmem:[%s172 + $0x58] sm:$0xff] %vm469, %v448
      %482 = vst.msk [vmem:[%s172 + $0x60] sm:$0xff] %vm469, %v449
      %483 = vst.msk [vmem:[%s172 + $0x68] sm:$0xff] %vm469, %v450
      %484 = vst.msk [vmem:[%s172 + $0x70] sm:$0xff] %vm469, %v451
      %485 = vst.msk [vmem:[%s172 + $0x78] sm:$0xff] %vm469, %v452
      %486 = vst.msk [vmem:[%s172 + $0x80] sm:$0xff] %vm469, %v453
      %487 = vst.msk [vmem:[%s172 + $0x88] sm:$0xff] %vm469, %v454
      %488 = vst.msk [vmem:[%s172 + $0x90] sm:$0xff] %vm469, %v455
      %489 = vst.msk [vmem:[%s172 + $0x98] sm:$0xff] %vm469, %v456
      %490 = vst.msk [vmem:[%s172 + $0xa0] sm:$0xff] %vm469, %v457
      %491 = vst.msk [vmem:[%s172 + $0xa8] sm:$0xff] %vm469, %v458
      %492 = vst.msk [vmem:[%s172 + $0xb0] sm:$0xff] %vm469, %v459
      %493 = vst.msk [vmem:[%s172 + $0xb8] sm:$0xff] %vm469, %v460
      %494 = vst.msk [vmem:[%s172 + $0xc0] sm:$0xff] %vm469, %v461
      %495 = vst.msk [vmem:[%s172 + $0xc8] sm:$0xff] %vm469, %v462
      %496 = vst.msk [vmem:[%s172 + $0xd0] sm:$0xff] %vm469, %v463
      %497 = vst.msk [vmem:[%s172 + $0xd8] sm:$0xff] %vm469, %v464
      %498 = vst.msk [vmem:[%s172 + $0xe0] sm:$0xff] %vm469, %v465
      %499 = vst.msk [vmem:[%s172 + $0xe8] sm:$0xff] %vm469, %v466
      %500 = vst.msk [vmem:[%s172 + $0xf0] sm:$0xff] %vm469, %v467
      %501 = vst.msk [vmem:[%s172 + $0xf8] sm:$0xff] %vm469, %v468
      %s502 = smul.u32 32, %s14
      %p503 = scmp.lt.s32.totalorder %s502, 63
      %s504 = scalar_select %p503, %s502, 63
      %s505 = smul.addr %s504, 8
      %s506 = scalar_lea.vmem %s3, %s505
      // Predicated region
      $region33: #{tpu_custom_call.1} parent=31 // pred_check
        %p507 = pneg %p100
      $region34: #{tpu_custom_call.1} parent=31 // pred_check_branch
        %509 = sbr.rel (%p507) target = $region36
      $region35: #{tpu_custom_call.1} parent=31 // pred_region
        %s510 = smul.u32 32, %s14
      $region36: #{tpu_custom_call.1} parent=31 // pred_fallthru
        _
    $region32: #{tpu_custom_call.1} parent=5 // pred_fallthru
      _
    %p511 = scmp.le.s32.totalorder 2, %s9
    // Predicated region
    $region37: #{tpu_custom_call.1} parent=5 // pred_check
      %p512 = pneg %p511
    $region38: #{tpu_custom_call.1} parent=5 // pred_check_branch
      %514 = sbr.rel (%p512) target = $region40
    $region39: #{tpu_custom_call.1} parent=5 // pred_region
      %s515 = ssub.s32 %s9, 2
      // Predicated region
      $region41: #{tpu_custom_call.1} parent=39 // pred_check
        %p516 = pneg %p106
      $region42: #{tpu_custom_call.1} parent=39 // pred_check_branch
        %518 = sbr.rel (%p516) target = $region44
      $region43: #{tpu_custom_call.1} parent=39 // pred_region
        %s519 = smul.u32 32, %s15
        %p520 = scmp.lt.s32.totalorder %s519, 63
        %s521 = scalar_select %p520, %s519, 63
        %s522 = smul.addr %s521, 8
        %s523 = scalar_lea.vmem %s3, %s522
      $region44: #{tpu_custom_call.1} parent=39 // pred_fallthru
        _
    $region40: #{tpu_custom_call.1} parent=5 // pred_fallthru
      _
  $region6: #{tpu_custom_call.1} parent=0 // loop_footer
    %s13 = sadd.s32 1, %s9
  $region7: #{tpu_custom_call.1} parent=0 // loop_footer_branch
    %8 = sbr.rel target = $region3
  $region8: #{tpu_custom_call.1} parent=0 // loop_exit
    _

</llo_original>
